<compile_context>
chip_gen: v5e
topology: v5e:2x2
jax: 0.10.0
libtpu: 0.0.40
codegen_flags: <defaults>
</compile_context>

<pallas_src>
import functools

import jax
import jax.numpy as jnp
from jax.experimental import pallas as pl
from jax.experimental.pallas import tpu as pltpu

EPS = 1e-5            # torch.nn.InstanceNorm2d default eps
NEG_SLOPE = 0.2       # LeakyReLU negative slope
_LANE = 128           # output channels padded to a multiple of the TPU lane width
_TARGET_ROWS = 1024   # target output pixels per row tile
_VMEM_LIMIT = 48 * 1024 * 1024        # fits v5e/v6e (128 MiB) and v7x (64 MiB)
_FUSED_VMEM_BUDGET = 40 * 1024 * 1024 # rough budget used to decide fused vs two-pass


# ----------------------------------------------------------------------------------------
# Fused kernel: conv (2 row taps, 3 matmuls) + per-image stats + in-place norm/LeakyReLU.
# ----------------------------------------------------------------------------------------
def _fused_conv_norm_kernel(x_ref, h_ref, w_ref, o_ref, sum_ref, ssq_ref, *,
                            n_tiles, inv_count):
    t = pl.program_id(2)
    m = x_ref.shape[1]        # tr * Wo   output pixels in this row tile
    wo = h_ref.shape[1]       # Wo        one spatial row of output pixels

    @pl.when(t == 0)
    def _():
        sum_ref[...] = jnp.zeros_like(sum_ref)
        ssq_ref[...] = jnp.zeros_like(ssq_ref)

    # Conv: tap-0 over this tile, tap-1 over the tile shifted by one output row (Wo pixels)
    # plus the one-row halo.  No staging copy; operands are read straight from the refs.
    acc0 = jnp.dot(x_ref[0], w_ref[0], preferred_element_type=jnp.float32)          # (m, cb)
    top = acc0[:m - wo] + jnp.dot(x_ref[0, wo:m], w_ref[1],
                                  preferred_element_type=jnp.float32)               # (m-wo, cb)
    bot = acc0[m - wo:] + jnp.dot(h_ref[0], w_ref[1],
                                  preferred_element_type=jnp.float32)               # (wo, cb)

    row0 = pl.multiple_of(t * m, 8)
    o_ref[0, pl.ds(row0, m - wo)] = top
    o_ref[0, pl.ds(row0 + (m - wo), wo)] = bot

    # Single-pass InstanceNorm statistics, accumulated in VMEM scratch across row tiles.
    sum_ref[...] += (jnp.sum(top, axis=0, keepdims=True)
                     + jnp.sum(bot, axis=0, keepdims=True))
    ssq_ref[...] += (jnp.sum(top * top, axis=0, keepdims=True)
                     + jnp.sum(bot * bot, axis=0, keepdims=True))

    # Finalize: normalize + LeakyReLU in place on the resident per-image output slab.
    @pl.when(t == n_tiles - 1)
    def _():
        mean = sum_ref[...] * inv_count                                   # (1, cb)
        # Zero-padded output channels give var == 0 -> rsqrt(eps); they output 0 and are
        # stripped in the wrapper, so this is harmless.
        var = jnp.maximum(ssq_ref[...] * inv_count - mean * mean, 0.0)
        scale = jax.lax.rsqrt(var + EPS)

        @pl.loop(0, n_tiles)
        def _(s):
            row = pl.multiple_of(s * m, 8)
            y = o_ref[0, pl.ds(row, m)]
            yn = (y - mean) * scale
            o_ref[0, pl.ds(row, m)] = jnp.where(yn >= 0, yn, NEG_SLOPE * yn)


# ----------------------------------------------------------------------------------------
# Two-pass fallback (for images whose output slab does not fit VMEM).
# ----------------------------------------------------------------------------------------
def _conv_stats_kernel(x_ref, h_ref, w_ref, y_ref, sum_ref, ssq_ref):
    """Pass 1: conv + per-image channel sum / sum-of-squares (resident output blocks)."""
    t = pl.program_id(1)
    m = x_ref.shape[1]
    wo = h_ref.shape[1]

    @pl.when(t == 0)
    def _():
        sum_ref[...] = jnp.zeros_like(sum_ref)
        ssq_ref[...] = jnp.zeros_like(ssq_ref)

    acc0 = jnp.dot(x_ref[0], w_ref[0], preferred_element_type=jnp.float32)
    top = acc0[:m - wo] + jnp.dot(x_ref[0, wo:m], w_ref[1],
                                  preferred_element_type=jnp.float32)
    bot = acc0[m - wo:] + jnp.dot(h_ref[0], w_ref[1],
                                  preferred_element_type=jnp.float32)

    y_ref[0, :m - wo] = top.astype(y_ref.dtype)
    y_ref[0, m - wo:] = bot.astype(y_ref.dtype)

    sum_ref[0] += (jnp.sum(top, axis=0, keepdims=True)
                   + jnp.sum(bot, axis=0, keepdims=True))
    ssq_ref[0] += (jnp.sum(top * top, axis=0, keepdims=True)
                   + jnp.sum(bot * bot, axis=0, keepdims=True))


def _norm_act_kernel(y_ref, sum_ref, ssq_ref, o_ref, *, inv_count):
    """Pass 2: InstanceNorm (affine=False, biased variance) + LeakyReLU(0.2), per tile."""
    y = y_ref[0].astype(jnp.float32)
    mean = sum_ref[0] * inv_count
    var = jnp.maximum(ssq_ref[0] * inv_count - mean * mean, 0.0)
    yn = (y - mean) * jax.lax.rsqrt(var + EPS)
    o_ref[0] = jnp.where(yn >= 0, yn, NEG_SLOPE * yn).astype(o_ref.dtype)


# ----------------------------------------------------------------------------------------
# Tiling helpers.
# ----------------------------------------------------------------------------------------
def _pick_row_tile(ho, wo, row_tile):
    if wo % 8:
        raise ValueError(f"UNetDown Pallas kernel needs Wo % 8 == 0; got Wo={wo}")
    tr = row_tile if row_tile is not None else max(1, _TARGET_ROWS // wo)
    tr = max(1, min(int(tr), ho))
    while ho % tr:                 # tiles must cover Ho exactly (keeps stats exact)
        tr -= 1
    return tr


def _pick_channel_block(coutp, hw, channel_block):
    if channel_block is not None:
        cb = int(channel_block)
        if cb % _LANE or coutp % cb:
            raise ValueError(f"channel_block must be a lane-multiple divisor of {coutp}")
        return cb
    nb = coutp // _LANE
    budget = _FUSED_VMEM_BUDGET // 2          # share for the double-buffered output slab
    for d in range(nb, 0, -1):
        if nb % d == 0 and 2 * hw * d * _LANE * 4 <= budget:
            return d * _LANE
    return _LANE


def _fused_fits(hw, m, wo, c8, cb, itemsize):
    out_bytes = 2 * hw * cb * 4               # resident output slab, double-buffered f32
    in_bytes = 2 * (m + wo) * c8 * itemsize   # x tile + halo, double-buffered
    w_bytes = 2 * 2 * c8 * cb * itemsize      # weight, double-buffered
    tmp_bytes = 3 * m * cb * 4                # matmul / normalize temporaries (rough)
    return out_bytes + in_bytes + w_bytes + tmp_bytes + (1 << 20) <= _FUSED_VMEM_BUDGET


# ----------------------------------------------------------------------------------------
# Wrapper.
# ----------------------------------------------------------------------------------------
def unet_down(x, weight_oihw, *, compute_dtype=jnp.bfloat16, row_tile=None,
              channel_block=None, nhwc_in=False, channels_last=False,
              force_two_pass=False):
    """UNetDown forward: Conv2d(4,2,1,bias=False) -> InstanceNorm2d -> LeakyReLU(0.2).

    x:           (N, Cin, H, W) float32 (PyTorch layout), or (N, H, W, Cin) if nhwc_in=True.
    weight_oihw: (Cout, Cin, 4, 4) float32 (PyTorch layout).
    Returns (N, Cout, H//2, W//2) float32, or (N, H//2, W//2, Cout) if channels_last=True.
    """
    x = x.astype(compute_dtype)               # cast before any layout shuffle (perf review)
    if nhwc_in:
        N, H, W, Cin = x.shape
        x_nhwc = x
    else:
        N, Cin, H, W = x.shape
        x_nhwc = x.transpose(0, 2, 3, 1)
    Cout = weight_oihw.shape[0]
    assert weight_oihw.shape == (Cout, Cin, 4, 4)
    assert H % 2 == 0 and W % 2 == 0, "k=4, s=2, p=1 conv expects even H and W"
    Ho, Wo = H // 2, W // 2
    HW = Ho * Wo
    C8 = 8 * Cin                                      # packed (dy, kw, c) contraction dim
    Coutp = -(-Cout // _LANE) * _LANE                 # lane-dense output channels

    tr = _pick_row_tile(Ho, Wo, row_tile)
    n_tiles = Ho // tr
    m = tr * Wo

    # ---- XLA-side prep (bf16): space-to-depth + 4 column taps, one (Ho+1) row slab -------
    # X[n, i'*Wo + j, (dy, kw, c)] = x_pad[n, 2*i' + dy, 2*j + kw, c]
    #   out(i, j, :) = X[n, i*Wo + j, :] @ Wm[0] + X[n, (i+1)*Wo + j, :] @ Wm[1]
    xh = jnp.pad(x_nhwc, ((0, 0), (1, 1), (1, 1), (0, 0)))
    xh = xh.reshape(N, Ho + 1, 2, W + 2, Cin)                        # (n, i', dy, col, c)
    taps = [xh[:, :, :, kw:kw + 2 * Wo:2, :] for kw in range(4)]     # 4 x (n, i', dy, j, c)
    xc = jnp.stack(taps, axis=3)                                     # (n, i', dy, kw, j, c)
    xc = xc.transpose(0, 1, 4, 2, 3, 5).reshape(N, Ho + 1, Wo, C8)   # (n, i', j, (dy,kw,c))
    x_cat = xc.reshape(N, (Ho + 1) * Wo, C8)

    # Weight (Cout, Cin, 4, 4) -> Wm[di, (dy, kw, c), o], zero-padded to Coutp lanes.
    wm = weight_oihw.reshape(Cout, Cin, 2, 2, 4)          # (o, c, di, dy, kw), kh = 2*di+dy
    wm = wm.transpose(2, 3, 4, 1, 0).reshape(2, C8, Cout)
    wm = jnp.pad(wm, ((0, 0), (0, 0), (0, Coutp - Cout))).astype(compute_dtype)

    itemsize = jnp.dtype(compute_dtype).itemsize
    inv_count = 1.0 / HW

    cb = _pick_channel_block(Coutp, HW, channel_block)
    use_fused = (not force_two_pass) and _fused_fits(HW, m, Wo, C8, cb, itemsize)

    if use_fused:
        n_cblk = Coutp // cb
        cost = pl.CostEstimate(
            flops=int(4 * N * HW * C8 * Coutp + 8 * N * HW * Coutp),
            transcendentals=int(N * Coutp),
            bytes_accessed=int(n_cblk * (x_cat.size + N * n_tiles * Wo * C8) * itemsize
                               + wm.size * itemsize + N * HW * Coutp * 4))
        out_flat = pl.pallas_call(
            functools.partial(_fused_conv_norm_kernel, n_tiles=n_tiles, inv_count=inv_count),
            out_shape=jax.ShapeDtypeStruct((N, HW, Coutp), jnp.float32),
            grid_spec=pltpu.PrefetchScalarGridSpec(
                num_scalar_prefetch=0,
                grid=(N, n_cblk, n_tiles),
                in_specs=[
                    pl.BlockSpec((1, m, C8), lambda n, c, t: (n, t, 0)),
                    # halo row: same x_cat array, Wo-sized block at row group (t+1)*tr
                    pl.BlockSpec((1, Wo, C8), lambda n, c, t: (n, (t + 1) * tr, 0)),
                    # weight: resident per channel block
                    pl.BlockSpec((2, C8, cb), lambda n, c, t: (0, 0, c)),
                ],
                # full per-image output slab resident across the row-tile axis
                out_specs=pl.BlockSpec((1, HW, cb), lambda n, c, t: (n, 0, c)),
                scratch_shapes=[pltpu.VMEM((1, cb), jnp.float32),
                                pltpu.VMEM((1, cb), jnp.float32)],
            ),
            compiler_params=pltpu.CompilerParams(
                dimension_semantics=("parallel", "parallel", "arbitrary"),
                vmem_limit_bytes=_VMEM_LIMIT,
            ),
            cost_estimate=cost,
        )(x_cat, x_cat, wm)
    else:
        # Two-pass fallback: per-tile conv output stored in compute_dtype, then normalize.
        cost1 = pl.CostEstimate(
            flops=int(4 * N * HW * C8 * Coutp),
            transcendentals=0,
            bytes_accessed=int((x_cat.size + N * n_tiles * Wo * C8 + wm.size) * itemsize
                               + N * HW * Coutp * itemsize + 2 * N * Coutp * 4))
        y_conv, ch_sum, ch_ssq = pl.pallas_call(
            _conv_stats_kernel,
            out_shape=(jax.ShapeDtypeStruct((N, HW, Coutp), compute_dtype),
                       jax.ShapeDtypeStruct((N, 1, Coutp), jnp.float32),
                       jax.ShapeDtypeStruct((N, 1, Coutp), jnp.float32)),
            grid_spec=pltpu.PrefetchScalarGridSpec(
                num_scalar_prefetch=0,
                grid=(N, n_tiles),
                in_specs=[
                    pl.BlockSpec((1, m, C8), lambda n, t: (n, t, 0)),
                    pl.BlockSpec((1, Wo, C8), lambda n, t: (n, (t + 1) * tr, 0)),
                    pl.BlockSpec((2, C8, Coutp), lambda n, t: (0, 0, 0)),
                ],
                out_specs=[
                    pl.BlockSpec((1, m, Coutp), lambda n, t: (n, t, 0)),
                    pl.BlockSpec((1, 1, Coutp), lambda n, t: (n, 0, 0)),
                    pl.BlockSpec((1, 1, Coutp), lambda n, t: (n, 0, 0)),
                ],
            ),
            compiler_params=pltpu.CompilerParams(
                dimension_semantics=("parallel", "arbitrary"),
                vmem_limit_bytes=_VMEM_LIMIT,
            ),
            cost_estimate=cost1,
        )(x_cat, x_cat, wm)

        cost2 = pl.CostEstimate(
            flops=int(6 * N * HW * Coutp),
            transcendentals=int(N * Coutp),
            bytes_accessed=int(N * HW * Coutp * (itemsize + 4) + 2 * N * Coutp * 4))
        out_flat = pl.pallas_call(
            functools.partial(_norm_act_kernel, inv_count=inv_count),
            out_shape=jax.ShapeDtypeStruct((N, HW, Coutp), jnp.float32),
            grid_spec=pltpu.PrefetchScalarGridSpec(
                num_scalar_prefetch=0,
                grid=(N, n_tiles),
                in_specs=[
                    pl.BlockSpec((1, m, Coutp), lambda n, t: (n, t, 0)),
                    pl.BlockSpec((1, 1, Coutp), lambda n, t: (n, 0, 0)),
                    pl.BlockSpec((1, 1, Coutp), lambda n, t: (n, 0, 0)),
                ],
                out_specs=pl.BlockSpec((1, m, Coutp), lambda n, t: (n, t, 0)),
            ),
            compiler_params=pltpu.CompilerParams(
                dimension_semantics=("parallel", "parallel"),
                vmem_limit_bytes=_VMEM_LIMIT,
            ),
            cost_estimate=cost2,
        )(y_conv, ch_sum, ch_ssq)

    out = out_flat[:, :, :Cout].reshape(N, Ho, Wo, Cout)      # strip channel padding
    if channels_last:
        return out                                            # (N, Ho, Wo, Cout)
    return out.transpose(0, 3, 1, 2)                          # PyTorch NCHW


# ----------------------------------------------------------------------------------------
# Pure-JAX reference of the PyTorch module.
# ----------------------------------------------------------------------------------------
def _reference(x, w):
    y = jax.lax.conv_general_dilated(
        x, w, window_strides=(2, 2), padding=((1, 1), (1, 1)),
        dimension_numbers=("NCHW", "OIHW", "NCHW"))
    mean = jnp.mean(y, axis=(2, 3), keepdims=True)
    var = jnp.mean((y - mean) ** 2, axis=(2, 3), keepdims=True)   # biased, as InstanceNorm2d
    y = (y - mean) * jax.lax.rsqrt(var + EPS)
    return jnp.where(y >= 0, y, NEG_SLOPE * y)


if __name__ == "__main__":
    key = jax.random.PRNGKey(0)
    kx, kw, kw2 = jax.random.split(key, 3)

    N, Cin, H, W = 2, 4, 16, 16
    Cout = 8

    x = jax.random.normal(kx, (N, Cin, H, W), dtype=jnp.float32)
    weight = jax.random.normal(kw, (Cout, Cin, 4, 4), dtype=jnp.float32) * 0.1

    ref = _reference(x, weight)

    # 1) Default fast path: fused single pass, bf16 MXU matmuls, auto row tile.
    out = jax.block_until_ready(unet_down(x, weight))
    assert out.shape == (N, Cout, H // 2, W // 2)
    assert jnp.allclose(out, ref, atol=3e-2, rtol=3e-2), "bf16 fused path mismatch"

    # 2) f32 compute with multiple row tiles: exercises halo fetch + cross-tile statistics
    #    accumulation in the fused kernel, tight numerics against the XLA reference.
    out32 = jax.block_until_ready(
        unet_down(x, weight, compute_dtype=jnp.float32, row_tile=2))
    assert jnp.allclose(out32, ref, atol=1e-4, rtol=1e-4), "f32 fused path mismatch"

    # 3) Two-pass fallback path (used when a full image's output slab does not fit VMEM).
    out_fb = jax.block_until_ready(
        unet_down(x, weight, compute_dtype=jnp.float32, row_tile=2, force_two_pass=True))
    assert jnp.allclose(out_fb, ref, atol=1e-4, rtol=1e-4), "two-pass fallback mismatch"

    # 4) Channel-block split (v7x N=1 megacore knob) with a wider layer.
    Cout2 = 256
    w2 = jax.random.normal(kw2, (Cout2, Cin, 4, 4), dtype=jnp.float32) * 0.1
    x1 = x[:1]
    ref2 = _reference(x1, w2)
    out_cb = jax.block_until_ready(unet_down(x1, w2, channel_block=128))
    assert out_cb.shape == (1, Cout2, H // 2, W // 2)
    assert jnp.allclose(out_cb, ref2, atol=3e-2, rtol=3e-2), "channel-split path mismatch"

    print("KERNEL_OK")
</pallas_src>

<mosaic_0001>
module attributes {stable_mosaic.version = 11 : i64} {
  func.func @_fused_conv_norm_kernel(%arg0: i32, %arg1: i32, %arg2: i32, %arg3: memref<1x64x32xbf16, #tpu.memory_space<vmem>>, %arg4: memref<1x8x32xbf16, #tpu.memory_space<vmem>>, %arg5: memref<2x32x128xbf16, #tpu.memory_space<vmem>>, %arg6: memref<1x64x128xf32, #tpu.memory_space<vmem>>, %arg7: memref<1x128xf32, #tpu.memory_space<vmem>>, %arg8: memref<1x128xf32, #tpu.memory_space<vmem>>) attributes {dimension_semantics = [#tpu.dimension_semantics<parallel>, #tpu.dimension_semantics<parallel>, #tpu.dimension_semantics<arbitrary>], iteration_bounds = array<i64: 2, 1, 1>, scalar_prefetch = 0 : i64, scratch_operands = 2 : i64, tpu.core_type = #tpu.core_type<tc>, window_params = [{transform_indices = @transform_0, window_bounds = array<i64: 1, 64, 32>}, {transform_indices = @transform_1, window_bounds = array<i64: 1, 8, 32>}, {transform_indices = @transform_2, window_bounds = array<i64: 2, 32, 128>}, {transform_indices = @transform_3, window_bounds = array<i64: 1, 64, 128>}]} {
    %c0_i32 = arith.constant 0 : i32
    %0 = arith.cmpi eq, %arg2, %c0_i32 : i32
    %1 = arith.extui %0 : i1 to i32
    %c0_i32_0 = arith.constant 0 : i32
    %2 = arith.cmpi ne, %1, %c0_i32_0 : i32
    scf.if %2 {
      %cst_36 = arith.constant 0.000000e+00 : f32
      %54 = vector.broadcast %cst_36 : f32 to vector<1x128xf32>
      %c0_37 = arith.constant 0 : index
      %c0_38 = arith.constant 0 : index
      %55 = vector.load %arg7[%c0_37, %c0_38] : memref<1x128xf32, #tpu.memory_space<vmem>>, vector<1x128xf32>
      tpu.vector_store %arg7[%c0_37, %c0_38], %54 {strides = array<i32>} : memref<1x128xf32, #tpu.memory_space<vmem>>, vector<1x128xf32>,
      %cst_39 = arith.constant 0.000000e+00 : f32
      %56 = vector.broadcast %cst_39 : f32 to vector<1x128xf32>
      %c0_40 = arith.constant 0 : index
      %c0_41 = arith.constant 0 : index
      %57 = vector.load %arg8[%c0_40, %c0_41] : memref<1x128xf32, #tpu.memory_space<vmem>>, vector<1x128xf32>
      tpu.vector_store %arg8[%c0_40, %c0_41], %56 {strides = array<i32>} : memref<1x128xf32, #tpu.memory_space<vmem>>, vector<1x128xf32>,
    } else {
    }
    %c0 = arith.constant 0 : index
    %c0_1 = arith.constant 0 : index
    %c0_2 = arith.constant 0 : index
    %3 = vector.load %arg3[%c0, %c0_1, %c0_2] : memref<1x64x32xbf16, #tpu.memory_space<vmem>>, vector<1x64x32xbf16>
    %4 = vector.shape_cast %3 : vector<1x64x32xbf16> to vector<64x32xbf16>
    %c0_3 = arith.constant 0 : index
    %c0_4 = arith.constant 0 : index
    %c0_5 = arith.constant 0 : index
    %5 = vector.load %arg5[%c0_3, %c0_4, %c0_5] : memref<2x32x128xbf16, #tpu.memory_space<vmem>>, vector<1x32x128xbf16>
    %6 = vector.shape_cast %5 : vector<1x32x128xbf16> to vector<32x128xbf16>
    %cst = arith.constant dense<0.000000e+00> : vector<64x128xf32>
    %7 = tpu.matmul %4, %6, %cst {dimension_numbers = #tpu.dot_dimension_numbers<[1], [0], [0], [1], [0, 0, 1, 1], [], []>} : vector<64x32xbf16>, vector<32x128xbf16>, vector<64x128xf32> -> vector<64x128xf32>
    %8 = vector.extract_strided_slice %7 {offsets = [0, 0], sizes = [56, 128], strides = [1, 1]} : vector<64x128xf32> to vector<56x128xf32>
    %c0_6 = arith.constant 0 : index
    %c8 = arith.constant 8 : index
    %c0_7 = arith.constant 0 : index
    %9 = vector.load %arg3[%c0_6, %c8, %c0_7] : memref<1x64x32xbf16, #tpu.memory_space<vmem>>, vector<1x56x32xbf16>
    %10 = vector.shape_cast %9 : vector<1x56x32xbf16> to vector<56x32xbf16>
    %c1 = arith.constant 1 : index
    %c0_8 = arith.constant 0 : index
    %c0_9 = arith.constant 0 : index
    %11 = vector.load %arg5[%c1, %c0_8, %c0_9] : memref<2x32x128xbf16, #tpu.memory_space<vmem>>, vector<1x32x128xbf16>
    %12 = vector.shape_cast %11 : vector<1x32x128xbf16> to vector<32x128xbf16>
    %cst_10 = arith.constant dense<0.000000e+00> : vector<56x128xf32>
    %13 = tpu.matmul %10, %12, %cst_10 {dimension_numbers = #tpu.dot_dimension_numbers<[1], [0], [0], [1], [0, 0, 1, 1], [], []>} : vector<56x32xbf16>, vector<32x128xbf16>, vector<56x128xf32> -> vector<56x128xf32>
    %14 = arith.addf %8, %13 : vector<56x128xf32>
    %15 = vector.extract_strided_slice %7 {offsets = [56, 0], sizes = [8, 128], strides = [1, 1]} : vector<64x128xf32> to vector<8x128xf32>
    %c0_11 = arith.constant 0 : index
    %c0_12 = arith.constant 0 : index
    %c0_13 = arith.constant 0 : index
    %16 = vector.load %arg4[%c0_11, %c0_12, %c0_13] : memref<1x8x32xbf16, #tpu.memory_space<vmem>>, vector<1x8x32xbf16>
    %17 = vector.shape_cast %16 : vector<1x8x32xbf16> to vector<8x32xbf16>
    %c1_14 = arith.constant 1 : index
    %c0_15 = arith.constant 0 : index
    %c0_16 = arith.constant 0 : index
    %18 = vector.load %arg5[%c1_14, %c0_15, %c0_16] : memref<2x32x128xbf16, #tpu.memory_space<vmem>>, vector<1x32x128xbf16>
    %19 = vector.shape_cast %18 : vector<1x32x128xbf16> to vector<32x128xbf16>
    %cst_17 = arith.constant dense<0.000000e+00> : vector<8x128xf32>
    %20 = tpu.matmul %17, %19, %cst_17 {dimension_numbers = #tpu.dot_dimension_numbers<[1], [0], [0], [1], [0, 0, 1, 1], [], []>} : vector<8x32xbf16>, vector<32x128xbf16>, vector<8x128xf32> -> vector<8x128xf32>
    %21 = arith.addf %15, %20 : vector<8x128xf32>
    %c64_i32 = arith.constant 64 : i32
    %22 = arith.muli %arg2, %c64_i32 : i32
    %23 = tpu.assume_multiple %22, 8 : i32
    %c0_18 = arith.constant 0 : index
    %24 = arith.index_cast %23 : i32 to index
    %c0_19 = arith.constant 0 : index
    %25 = vector.load %arg6[%c0_18, %24, %c0_19] : memref<1x64x128xf32, #tpu.memory_space<vmem>>, vector<1x56x128xf32>
    %26 = vector.shape_cast %25 : vector<1x56x128xf32> to vector<56x128xf32>
    %27 = vector.shape_cast %14 : vector<56x128xf32> to vector<1x56x128xf32>
    tpu.vector_store %arg6[%c0_18, %24, %c0_19], %27 {strides = array<i32>} : memref<1x64x128xf32, #tpu.memory_space<vmem>>, vector<1x56x128xf32>,
    %c56_i32 = arith.constant 56 : i32
    %28 = arith.addi %23, %c56_i32 : i32
    %c0_20 = arith.constant 0 : index
    %29 = arith.index_cast %28 : i32 to index
    %c0_21 = arith.constant 0 : index
    %30 = vector.load %arg6[%c0_20, %29, %c0_21] : memref<1x64x128xf32, #tpu.memory_space<vmem>>, vector<1x8x128xf32>
    %31 = vector.shape_cast %30 : vector<1x8x128xf32> to vector<8x128xf32>
    %32 = vector.shape_cast %21 : vector<8x128xf32> to vector<1x8x128xf32>
    tpu.vector_store %arg6[%c0_20, %29, %c0_21], %32 {strides = array<i32>} : memref<1x64x128xf32, #tpu.memory_space<vmem>>, vector<1x8x128xf32>,
    %c0_22 = arith.constant 0 : index
    %c0_23 = arith.constant 0 : index
    %33 = vector.load %arg7[%c0_22, %c0_23] : memref<1x128xf32, #tpu.memory_space<vmem>>, vector<1x128xf32>
    %cst_24 = arith.constant dense<0.000000e+00> : vector<128xf32>
    %34 = vector.multi_reduction <add>, %14, %cst_24 [0] : vector<56x128xf32> to vector<128xf32>
    %35 = vector.shape_cast %34 : vector<128xf32> to vector<1x128xf32>
    %cst_25 = arith.constant dense<0.000000e+00> : vector<128xf32>
    %36 = vector.multi_reduction <add>, %21, %cst_25 [0] : vector<8x128xf32> to vector<128xf32>
    %37 = vector.shape_cast %36 : vector<128xf32> to vector<1x128xf32>
    %38 = arith.addf %35, %37 : vector<1x128xf32>
    %39 = arith.addf %33, %38 : vector<1x128xf32>
    %c0_26 = arith.constant 0 : index
    %c0_27 = arith.constant 0 : index
    %40 = vector.load %arg7[%c0_26, %c0_27] : memref<1x128xf32, #tpu.memory_space<vmem>>, vector<1x128xf32>
    tpu.vector_store %arg7[%c0_26, %c0_27], %39 {strides = array<i32>} : memref<1x128xf32, #tpu.memory_space<vmem>>, vector<1x128xf32>,
    %c0_28 = arith.constant 0 : index
    %c0_29 = arith.constant 0 : index
    %41 = vector.load %arg8[%c0_28, %c0_29] : memref<1x128xf32, #tpu.memory_space<vmem>>, vector<1x128xf32>
    %42 = arith.mulf %14, %14 : vector<56x128xf32>
    %cst_30 = arith.constant dense<0.000000e+00> : vector<128xf32>
    %43 = vector.multi_reduction <add>, %42, %cst_30 [0] : vector<56x128xf32> to vector<128xf32>
    %44 = vector.shape_cast %43 : vector<128xf32> to vector<1x128xf32>
    %45 = arith.mulf %21, %21 : vector<8x128xf32>
    %cst_31 = arith.constant dense<0.000000e+00> : vector<128xf32>
    %46 = vector.multi_reduction <add>, %45, %cst_31 [0] : vector<8x128xf32> to vector<128xf32>
    %47 = vector.shape_cast %46 : vector<128xf32> to vector<1x128xf32>
    %48 = arith.addf %44, %47 : vector<1x128xf32>
    %49 = arith.addf %41, %48 : vector<1x128xf32>
    %c0_32 = arith.constant 0 : index
    %c0_33 = arith.constant 0 : index
    %50 = vector.load %arg8[%c0_32, %c0_33] : memref<1x128xf32, #tpu.memory_space<vmem>>, vector<1x128xf32>
    tpu.vector_store %arg8[%c0_32, %c0_33], %49 {strides = array<i32>} : memref<1x128xf32, #tpu.memory_space<vmem>>, vector<1x128xf32>,
    %c0_i32_34 = arith.constant 0 : i32
    %51 = arith.cmpi eq, %arg2, %c0_i32_34 : i32
    %52 = arith.extui %51 : i1 to i32
    %c0_i32_35 = arith.constant 0 : i32
    %53 = arith.cmpi ne, %52, %c0_i32_35 : i32
    scf.if %53 {
      %c0_36 = arith.constant 0 : index
      %c0_37 = arith.constant 0 : index
      %54 = vector.load %arg7[%c0_36, %c0_37] : memref<1x128xf32, #tpu.memory_space<vmem>>, vector<1x128xf32>
      %cst_38 = arith.constant 1.562500e-02 : f32
      %55 = vector.broadcast %cst_38 : f32 to vector<1x128xf32>
      %56 = arith.mulf %54, %55 : vector<1x128xf32>
      %c0_39 = arith.constant 0 : index
      %c0_40 = arith.constant 0 : index
      %57 = vector.load %arg8[%c0_39, %c0_40] : memref<1x128xf32, #tpu.memory_space<vmem>>, vector<1x128xf32>
      %cst_41 = arith.constant 1.562500e-02 : f32
      %58 = vector.broadcast %cst_41 : f32 to vector<1x128xf32>
      %59 = arith.mulf %57, %58 : vector<1x128xf32>
      %60 = arith.mulf %56, %56 : vector<1x128xf32>
      %61 = arith.subf %59, %60 : vector<1x128xf32>
      %cst_42 = arith.constant 0.000000e+00 : f32
      %62 = vector.broadcast %cst_42 : f32 to vector<1x128xf32>
      %63 = arith.maximumf %61, %62 : vector<1x128xf32>
      %cst_43 = arith.constant 9.99999974E-6 : f32
      %64 = vector.broadcast %cst_43 : f32 to vector<1x128xf32>
      %65 = arith.addf %63, %64 : vector<1x128xf32>
      %66 = math.rsqrt %65 : vector<1x128xf32>
      %c0_i32_44 = arith.constant 0 : i32
      %c1_i32 = arith.constant 1 : i32
      %67 = arith.muli %c0_i32_44, %c1_i32 : i32
      %c0_i32_45 = arith.constant 0 : i32
      %68 = arith.addi %c0_i32_45, %67 : i32
      %c64_i32_46 = arith.constant 64 : i32
      %69 = arith.muli %68, %c64_i32_46 : i32
      %70 = tpu.assume_multiple %69, 8 : i32
      %c0_47 = arith.constant 0 : index
      %71 = arith.index_cast %70 : i32 to index
      %c0_48 = arith.constant 0 : index
      %72 = vector.load %arg6[%c0_47, %71, %c0_48] : memref<1x64x128xf32, #tpu.memory_space<vmem>>, vector<1x64x128xf32>
      %73 = vector.shape_cast %72 : vector<1x64x128xf32> to vector<64x128xf32>
      %74 = vector.broadcast %56 : vector<1x128xf32> to vector<64x128xf32>
      %75 = arith.subf %73, %74 : vector<64x128xf32>
      %76 = vector.broadcast %66 : vector<1x128xf32> to vector<64x128xf32>
      %77 = arith.mulf %75, %76 : vector<64x128xf32>
      %cst_49 = arith.constant 0.000000e+00 : f32
      %78 = vector.broadcast %cst_49 : f32 to vector<64x128xf32>
      %79 = arith.cmpf oge, %77, %78 : vector<64x128xf32>
      %cst_50 = arith.constant 2.000000e-01 : f32
      %80 = vector.broadcast %cst_50 : f32 to vector<64x128xf32>
      %81 = arith.mulf %80, %77 : vector<64x128xf32>
      %82 = arith.select %79, %77, %81 : vector<64x128xi1>, vector<64x128xf32>
      %c0_51 = arith.constant 0 : index
      %83 = arith.index_cast %70 : i32 to index
      %c0_52 = arith.constant 0 : index
      %84 = vector.load %arg6[%c0_51, %83, %c0_52] : memref<1x64x128xf32, #tpu.memory_space<vmem>>, vector<1x64x128xf32>
      %85 = vector.shape_cast %84 : vector<1x64x128xf32> to vector<64x128xf32>
      %86 = vector.shape_cast %82 : vector<64x128xf32> to vector<1x64x128xf32>
      tpu.vector_store %arg6[%c0_51, %83, %c0_52], %86 {strides = array<i32>} : memref<1x64x128xf32, #tpu.memory_space<vmem>>, vector<1x64x128xf32>,
      %c1_i32_53 = arith.constant 1 : i32
    } else {
    }
    return
  }
  func.func @transform_0(%arg0: i32, %arg1: i32, %arg2: i32) -> (i32, i32, i32) {
    %c0_i32 = arith.constant 0 : i32
    %c0_i32_0 = arith.constant 0 : i32
    return %arg0, %arg2, %c0_i32 : i32, i32, i32
  }
  func.func @transform_1(%arg0: i32, %arg1: i32, %arg2: i32) -> (i32, i32, i32) {
    %c1_i32 = arith.constant 1 : i32
    %0 = arith.addi %arg2, %c1_i32 : i32
    %c8_i32 = arith.constant 8 : i32
    %1 = arith.muli %0, %c8_i32 : i32
    %c0_i32 = arith.constant 0 : i32
    %c0_i32_0 = arith.constant 0 : i32
    return %arg0, %1, %c0_i32 : i32, i32, i32
  }
  func.func @transform_2(%arg0: i32, %arg1: i32, %arg2: i32) -> (i32, i32, i32) {
    %c0_i32 = arith.constant 0 : i32
    %c0_i32_0 = arith.constant 0 : i32
    %c0_i32_1 = arith.constant 0 : i32
    return %c0_i32, %c0_i32_0, %arg1 : i32, i32, i32
  }
  func.func @transform_3(%arg0: i32, %arg1: i32, %arg2: i32) -> (i32, i32, i32) {
    %c0_i32 = arith.constant 0 : i32
    %c0_i32_0 = arith.constant 0 : i32
    return %arg0, %c0_i32, %arg1 : i32, i32, i32
  }
}

</mosaic_0001>

<llo_original>
// kernel: tpu_custom_call.1
$region0: #{tpu_custom_call.1}
  #allocation0 [shape = 'u32[]', space=smem, size = 0x4, offset = 0x4, fixed_abs, tag = 'smem constant byte address 0x4 - core index']
  #allocation1 [shape = 'u32[72,128]{1,0:T(1,128)}', space=vmem, size = 0x9000, scoped, tag = 'internal scratch']
  #allocation2 [shape = 'f32[1,128]{1,0:T(1,128)}', space=vmem, size = 0x200, scoped, tag = 'scratch operand']
  #allocation3 [shape = 'f32[1,128]{1,0:T(1,128)}', space=vmem, size = 0x200, scoped, tag = 'scratch operand']
  %s0 = inlined_call_operand.vmem [shape: bf16[2,72,32], index: 0, kind: input, shape index: {}]
  %s1 = inlined_call_operand.vmem [shape: bf16[2,72,32], index: 1, kind: input, shape index: {}]
  %s2 = inlined_call_operand.vmem [shape: bf16[2,32,128], index: 2, kind: input, shape index: {}]
  %s3 = inlined_call_operand.hbm [shape: f32[2,64,128], index: 3, kind: output, shape index: {}]
  %s4 = sld [smem:[#allocation0]]
  $region53: #{tpu_custom_call.1} parent=0
    _
  %s6 = ssub.s32 1, %s4
  %s7 = scalar_select 0, %s6, %s4
  $region1: #{tpu_custom_call.1} parent=0
    #allocation4 [shape = 'u8[65536]{0}', space=vmem, size = 0x10000, scoped, tag = 'output window, operand 0']
    #allocation5 [shape = 's32[2]{0}', space=sflag, size = 0x8, scoped, tag = 'scoped memory for tpu_custom_call.1']
    %8 = vsyncpa [#allocation5], 0
    %s9 = scalar_lea.sflag [#allocation5], 1
    %10 = vsyncpa %s9, 0
    loop: start=0, step=1, limit=4
    $region2: #{tpu_custom_call.1} parent=1 // loop_pre_header
      _
    $region3: #{tpu_custom_call.1} parent=1 // loop_header
      %s12 = sphi 0, %s16
      %p13 = scmp.ge.s32.totalorder %s12, 4
      %s19 = sphi 0, %s38
      %s20 = sphi 0, %s34
      %s21 = sphi 0, %s30
      %s22 = sphi 0, %s19
      %s23 = sphi 0, %s20
      %s24 = sphi 0, %s21
      %s25 = sphi 0, %s22
      %s26 = sphi 0, %s23
      %s27 = sphi 0, %s24
      %s43 = sphi 0, %s45
      %s46 = sphi 0, %s43
      %s47 = sphi 0, %s46
      %s63 = sphi 0, %s47
      %s75 = sphi 0, %s77
      %s78 = sphi 0, %s75
      %s79 = sphi 0, %s78
      %s95 = sphi 0, %s79
      %s101 = sphi 0, %s103
      %s104 = sphi 0, %s101
      %s105 = sphi 0, %s104
      %s121 = sphi 0, %s105
      %s129 = sphi 0, %s131
      %s132 = sphi 0, %s129
      %s133 = sphi 0, %s132
      %s149 = sphi 0, %s133
    $region4: #{tpu_custom_call.1} parent=1 // loop_header_branch
      %15 = sbr.rel (%p13) target = $region8
    $region5: #{tpu_custom_call.1} parent=1 // loop_body
      %s17 = ssub.s32 %s12, 1
      %s18 = ssub.s32 %s12, 2
      %s28 = sadd.s32 1, %s21
      %p29 = scmp.ge.s32.totalorder %s28, 1
      %s30 = scalar_select %p29, 0, %s28
      %s31 = sadd.s32 1, %s20
      %s32 = scalar_select %p29, %s31, %s20
      %p33 = scmp.ge.s32.totalorder %s32, 1
      %s34 = scalar_select %p33, 0, %s32
      %s35 = sadd.s32 1, %s19
      %s36 = scalar_select %p33, %s35, %s19
      %p37 = scmp.ge.s32.totalorder %s36, 2
      %s38 = scalar_select %p37, 0, %s36
      %s39 = ssub.s32 %s19, %s38
      %s40 = ssub.s32 %s21, %s30
      %s41 = sor.u32 %s39, %s40
      %p42 = scmp.eq.s32.totalorder %s41, 0
      %s44 = sadd.s32 %s43, 1
      %s45 = scalar_select %p42, %s43, %s44
      %p48 = pneg %p42
      %p49 = scmp.eq.s32.totalorder %s12, 1
      %p50 = por %p48, %p49
      %p51 = scmp.ne.s32.totalorder %s43, %s46
      %p52 = scmp.eq.s32.totalorder %s12, 0
      %p53 = por %p51, %p52
      %p54 = scmp.ne.s32.totalorder %s43, %s46
      %p55 = scmp.eq.s32.totalorder %s17, 1
      %p56 = por %p54, %p55
      %p57 = scmp.ne.s32.totalorder %s46, %s47
      %p58 = scmp.eq.s32.totalorder %s17, 0
      %p59 = por %p57, %p58
      %p60 = scmp.ne.s32.totalorder %s46, %s47
      %p61 = scmp.eq.s32.totalorder %s18, 1
      %p62 = por %p60, %p61
      %p64 = scmp.ne.s32.totalorder %s47, %s63
      %p65 = scmp.eq.s32.totalorder %s18, 0
      %p66 = por %p64, %p65
      %s67 = sadd.s32 %s21, 1
      %s68 = smul.u32 %s67, 8
      %s69 = sadd.s32 %s30, 1
      %s70 = smul.u32 %s69, 8
      %s71 = ssub.s32 %s19, %s38
      %s72 = ssub.s32 %s68, %s70
      %s73 = sor.u32 %s71, %s72
      %p74 = scmp.eq.s32.totalorder %s73, 0
      %s76 = sadd.s32 %s75, 1
      %s77 = scalar_select %p74, %s75, %s76
      %p80 = pneg %p74
      %p81 = scmp.eq.s32.totalorder %s12, 1
      %p82 = por %p80, %p81
      %p83 = scmp.ne.s32.totalorder %s75, %s78
      %p84 = scmp.eq.s32.totalorder %s12, 0
      %p85 = por %p83, %p84
      %p86 = scmp.ne.s32.totalorder %s75, %s78
      %p87 = scmp.eq.s32.totalorder %s17, 1
      %p88 = por %p86, %p87
      %p89 = scmp.ne.s32.totalorder %s78, %s79
      %p90 = scmp.eq.s32.totalorder %s17, 0
      %p91 = por %p89, %p90
      %p92 = scmp.ne.s32.totalorder %s78, %s79
      %p93 = scmp.eq.s32.totalorder %s18, 1
      %p94 = por %p92, %p93
      %p96 = scmp.ne.s32.totalorder %s79, %s95
      %p97 = scmp.eq.s32.totalorder %s18, 0
      %p98 = por %p96, %p97
      %s99 = ssub.s32 %s20, %s34
      %p100 = scmp.eq.s32.totalorder %s99, 0
      %s102 = sadd.s32 %s101, 1
      %s103 = scalar_select %p100, %s101, %s102
      %p106 = pneg %p100
      %p107 = scmp.eq.s32.totalorder %s12, 1
      %p108 = por %p106, %p107
      %p109 = scmp.ne.s32.totalorder %s101, %s104
      %p110 = scmp.eq.s32.totalorder %s12, 0
      %p111 = por %p109, %p110
      %p112 = scmp.ne.s32.totalorder %s101, %s104
      %p113 = scmp.eq.s32.totalorder %s17, 1
      %p114 = por %p112, %p113
      %p115 = scmp.ne.s32.totalorder %s104, %s105
      %p116 = scmp.eq.s32.totalorder %s17, 0
      %p117 = por %p115, %p116
      %p118 = scmp.ne.s32.totalorder %s104, %s105
      %p119 = scmp.eq.s32.totalorder %s18, 1
      %p120 = por %p118, %p119
      %p122 = scmp.ne.s32.totalorder %s105, %s121
      %p123 = scmp.eq.s32.totalorder %s18, 0
      %p124 = por %p122, %p123
      %s125 = ssub.s32 %s19, %s38
      %s126 = ssub.s32 %s20, %s34
      %s127 = sor.u32 %s125, %s126
      %p128 = scmp.eq.s32.totalorder %s127, 0
      %s130 = sadd.s32 %s129, 1
      %s131 = scalar_select %p128, %s129, %s130
      %p134 = pneg %p128
      %p135 = scmp.eq.s32.totalorder %s12, 1
      %p136 = por %p134, %p135
      %p137 = scmp.ne.s32.totalorder %s129, %s132
      %p138 = scmp.eq.s32.totalorder %s12, 0
      %p139 = por %p137, %p138
      %p140 = scmp.ne.s32.totalorder %s129, %s132
      %p141 = scmp.eq.s32.totalorder %s17, 1
      %p142 = por %p140, %p141
      %p143 = scmp.ne.s32.totalorder %s132, %s133
      %p144 = scmp.eq.s32.totalorder %s17, 0
      %p145 = por %p143, %p144
      %p146 = scmp.ne.s32.totalorder %s132, %s133
      %p147 = scmp.eq.s32.totalorder %s18, 1
      %p148 = por %p146, %p147
      %p150 = scmp.ne.s32.totalorder %s133, %s149
      %p151 = scmp.eq.s32.totalorder %s18, 0
      %p152 = por %p150, %p151
      %p153 = scmp.le.s32.totalorder 1, %s12
      %p154 = scmp.lt.s32.totalorder %s12, 3
      %p155 = pnand %p153, %p154
      %p156 = pneg %p155
      // Predicated region
      $region9: #{tpu_custom_call.1} parent=5 // pred_check
        _
      $region10: #{tpu_custom_call.1} parent=5 // pred_check_branch
        %158 = sbr.rel (%p155) target = $region12
      $region11: #{tpu_custom_call.1} parent=5 // pred_region
        %s159 = ssub.s32 %s12, 1
        // Predicated region
        $region13: #{tpu_custom_call.1} parent=11 // pred_check
          %p160 = pneg %p117
        $region14: #{tpu_custom_call.1} parent=11 // pred_check_branch
          %162 = sbr.rel (%p160) target = $region16
        $region15: #{tpu_custom_call.1} parent=11 // pred_region
          %p163 = scmp.lt.s32.totalorder %s23, 0
          %s164 = scalar_select %p163, %s23, 0
          %s165 = smul.addr %s164, 4
          %s166 = scalar_lea.vmem %s2, %s165
        $region16: #{tpu_custom_call.1} parent=11 // pred_fallthru
          _
      $region12: #{tpu_custom_call.1} parent=5 // pred_fallthru
        _
      %p167 = scmp.lt.s32.totalorder %s12, 2
      // Predicated region
      $region17: #{tpu_custom_call.1} parent=5 // pred_check
        %p168 = pneg %p167
      $region18: #{tpu_custom_call.1} parent=5 // pred_check_branch
        %170 = sbr.rel (%p168) target = $region20
      $region19: #{tpu_custom_call.1} parent=5 // pred_region
        // Predicated region
        $region21: #{tpu_custom_call.1} parent=19 // pred_check
          %p171 = pneg %p53
        $region22: #{tpu_custom_call.1} parent=19 // pred_check_branch
          %173 = sbr.rel (%p171) target = $region24
        $region23: #{tpu_custom_call.1} parent=19 // pred_region
          %s174 = smul.u32 8, %s21
          %s175 = ssub.s32 9, %s174
          %p176 = scmp.lt.s32.totalorder %s175, 8
          %s177 = scalar_select %p176, %s175, 8
          %s178 = smul.u32 4, %s177
          %p179 = scmp.lt.s32.totalorder %s19, 1
          %s180 = scalar_select %p179, %s19, 1
          %p181 = scmp.lt.s32.totalorder %s174, 8
          %s182 = scalar_select %p181, %s174, 8
          %s183 = smul.addr %s180, 9
          %s184 = sadd.s32 %s182, %s183
          %s185 = smul.addr %s184, 4
          %s186 = scalar_lea.vmem %s0, %s185
          %s187 = smul.u32 8, %s21
          %s188 = ssub.s32 9, %s187
          %p189 = scmp.lt.s32.totalorder %s188, 8
          %s190 = scalar_select %p189, %s188, 8
          %s191 = smul.u32 4, %s190
        $region24: #{tpu_custom_call.1} parent=19 // pred_fallthru
          _
        // Predicated region
        $region25: #{tpu_custom_call.1} parent=19 // pred_check
          %p192 = pneg %p85
        $region26: #{tpu_custom_call.1} parent=19 // pred_check_branch
          %194 = sbr.rel (%p192) target = $region28
        $region27: #{tpu_custom_call.1} parent=19 // pred_region
          %s195 = sadd.s32 %s21, 1
          %s196 = smul.u32 %s195, 8
          %p197 = scmp.lt.s32.totalorder %s19, 1
          %s198 = scalar_select %p197, %s19, 1
          %p199 = scmp.lt.s32.totalorder %s196, 8
          %s200 = scalar_select %p199, %s196, 8
          %s201 = smul.addr %s198, 9
          %s202 = sadd.s32 %s200, %s201
          %s203 = smul.addr %s202, 4
          %s204 = scalar_lea.vmem %s1, %s203
          %s205 = sadd.s32 %s21, 1
          %s206 = smul.u32 %s205, 8
        $region28: #{tpu_custom_call.1} parent=19 // pred_fallthru
          _
      $region20: #{tpu_custom_call.1} parent=5 // pred_fallthru
        _
      %p207 = scmp.le.s32.totalorder 1, %s12
      %p208 = scmp.lt.s32.totalorder %s12, 3
      %p209 = pnand %p207, %p208
      %p210 = pneg %p209
      // Predicated region
      $region29: #{tpu_custom_call.1} parent=5 // pred_check
        _
      $region30: #{tpu_custom_call.1} parent=5 // pred_check_branch
        %212 = sbr.rel (%p209) target = $region32
      $region31: #{tpu_custom_call.1} parent=5 // pred_region
        %s213 = ssub.s32 %s12, 1
        %s214 = smul.u32 8, %s24
        %s215 = ssub.s32 9, %s214
        %p216 = scmp.lt.s32.totalorder %s215, 8
        %s217 = scalar_select %p216, %s215, 8
        %s218 = smul.u32 4, %s217
        %p219 = scmp.lt.s32.totalorder %s22, 1
        %s220 = scalar_select %p219, %s22, 1
        %p221 = scmp.lt.s32.totalorder %s214, 8
        %s222 = scalar_select %p221, %s214, 8
        %s223 = smul.addr %s220, 9
        %s224 = sadd.s32 %s222, %s223
        %s225 = smul.addr %s224, 4
        %s226 = scalar_lea.vmem %s0, %s225
        %p227 = pneg %p59
        %p228 = pneg %p56
        %s229 = sadd.s32 %s24, 1
        %s230 = smul.u32 %s229, 8
        %p231 = scmp.lt.s32.totalorder %s22, 1
        %s232 = scalar_select %p231, %s22, 1
        %p233 = scmp.lt.s32.totalorder %s230, 8
        %s234 = scalar_select %p233, %s230, 8
        %s235 = smul.addr %s232, 9
        %s236 = sadd.s32 %s234, %s235
        %s237 = smul.addr %s236, 4
        %s238 = scalar_lea.vmem %s1, %s237
        %p239 = pneg %p91
        %p240 = pneg %p88
        %p241 = scmp.lt.s32.totalorder %s23, 0
        %s242 = scalar_select %p241, %s23, 0
        %s243 = smul.addr %s242, 4
        %s244 = scalar_lea.vmem %s2, %s243
        %p245 = pneg %p117
        %p246 = pneg %p114
        %p247 = pneg %p145
        %p248 = pneg %p142
        %s249 = sand.u32 %s132, 1
        %s250 = scalar_lea.sflag [#allocation5], %s249
        %s251 = sand.u32 %s132, 1
        %s252 = smul.addr %s251, 64
        %s253 = scalar_lea.vmem [#allocation4], %s252
        %s254 = smul.u32 8, %s24
        %s255 = ssub.s32 9, %s254
        %p256 = scmp.lt.s32.totalorder %s255, 8
        %s257 = scalar_select %p256, %s255, 8
        %s258 = smul.u32 4, %s257
        %p259 = scmp.lt.s32.totalorder %s22, 1
        %s260 = scalar_select %p259, %s22, 1
        %p261 = scmp.lt.s32.totalorder %s254, 8
        %s262 = scalar_select %p261, %s254, 8
        %s263 = smul.addr %s260, 9
        %s264 = sadd.s32 %s262, %s263
        %s265 = smul.addr %s264, 4
        %s266 = scalar_lea.vmem %s0, %s265
        %s267 = smul.u32 8, %s24
        %s268 = ssub.s32 9, %s267
        %p269 = scmp.lt.s32.totalorder %s268, 8
        %s270 = scalar_select %p269, %s268, 8
        %s271 = smul.u32 4, %s270
        %s272 = sadd.s32 %s24, 1
        %s273 = smul.u32 %s272, 8
        %p274 = scmp.lt.s32.totalorder %s22, 1
        %s275 = scalar_select %p274, %s22, 1
        %p276 = scmp.lt.s32.totalorder %s273, 8
        %s277 = scalar_select %p276, %s273, 8
        %s278 = smul.addr %s275, 9
        %s279 = sadd.s32 %s277, %s278
        %s280 = smul.addr %s279, 4
        %s281 = scalar_lea.vmem %s1, %s280
        %s282 = sadd.s32 %s24, 1
        %s283 = smul.u32 %s282, 8
        %p284 = scmp.lt.s32.totalorder %s23, 0
        %s285 = scalar_select %p284, %s23, 0
        %s286 = smul.addr %s285, 4
        %s287 = scalar_lea.vmem %s2, %s286
        %p289 = scmp.eq.s32.totalorder %s24, 0
        // Predicated region
        $region33: #{tpu_custom_call.1} parent=31 // pred_check
          %p290 = pneg %p289
        $region34: #{tpu_custom_call.1} parent=31 // pred_check_branch
          %292 = sbr.rel (%p290) target = $region36
        $region35: #{tpu_custom_call.1} parent=31 // pred_region
          %293 = vst [vmem:[#allocation2] sm:$0x1] 0.0
          %294 = vst [vmem:[#allocation3] sm:$0x1] 0.0
        $region36: #{tpu_custom_call.1} parent=31 // pred_fallthru
          _
        %v295 = vld [vmem:[%s266] sm:$0xf]
        %v296 = vld [vmem:[%s266 + $0x4] sm:$0xf]
        %v297 = vld [vmem:[%s266 + $0x8] sm:$0xf]
        %v298 = vld [vmem:[%s266 + $0xc] sm:$0xf]
        %v299 = vld [vmem:[%s266 + $0x10] sm:$0xf]
        %v300 = vld [vmem:[%s266 + $0x14] sm:$0xf]
        %v301 = vld [vmem:[%s266 + $0x18] sm:$0xf]
        %v302 = vld [vmem:[%s266 + $0x1c] sm:$0xf]
        %v303 = vld [vmem:[%s287] sm:$0xf]
        %v304 = vld [vmem:[%s287 + $0x4] sm:$0xf]
        %v305 = vld [vmem:[%s287 + $0x8] sm:$0xf]
        %v306 = vld [vmem:[%s287 + $0xc] sm:$0xf]
        %v315 = vunpack.c.l.b16 %v295
        %v316 = vunpack.c.l.b16 %v296
        %v317 = vunpack.c.l.b16 %v297
        %v318 = vunpack.c.l.b16 %v298
        %v319 = vunpack.c.l.b16 %v299
        %v320 = vunpack.c.l.b16 %v300
        %v321 = vunpack.c.l.b16 %v301
        %v322 = vunpack.c.l.b16 %v302
        %v323 = vpack.c.b16 %v316, %v315
        %v324 = vpack.c.b16 %v318, %v317
        %v325 = vpack.c.b16 %v320, %v319
        %v326 = vpack.c.b16 %v322, %v321
        %v331 = vunpack.c.l.b16 %v303
        %v332 = vunpack.c.l.b16 %v304
        %v333 = vunpack.c.l.b16 %v305
        %v334 = vunpack.c.l.b16 %v306
        %v335 = vpack.c.b16 %v332, %v331
        %v336 = vpack.c.b16 %v334, %v333
        %vm339 = vcmask 261120
        %v341 = vsel %vm339, %v323, 0
        %v344 = vsel %vm339, %v324, 0
        %v347 = vsel %vm339, %v325, 0
        %v350 = vsel %vm339, %v326, 0
        %352 = vmatpush.bf16.msra.mxu0 0
        %353 = vmatpush.bf16.msra.mxu0 0
        %354 = vmatpush.bf16.msra.mxu0 0
        %355 = vmatpush.bf16.msra.mxu0 0
        %356 = vmatpush.bf16.msra.mxu0 0
        %357 = vmatpush.bf16.msra.mxu0 0
        %358 = vmatpush.bf16.msra.mxu0 %v336
        %359 = vmatpush.bf16.msra.mxu0 %v335
        %360 = vmatmul.bf16.gmra.mxu0 %v341
        %v361 = vpop.f32.mrf.mxu0
        %v362 = vadd.f32 0.0, %v361
        %v363 = vpop.f32.mrf.mxu0
        %v364 = vadd.f32 0.0, %v363
        %365 = vmatmul.bf16.gmra.mxu0 %v344
        %v366 = vpop.f32.mrf.mxu0
        %v367 = vadd.f32 0.0, %v366
        %v368 = vpop.f32.mrf.mxu0
        %v369 = vadd.f32 0.0, %v368
        %370 = vmatmul.bf16.gmra.mxu0 %v347
        %v371 = vpop.f32.mrf.mxu0
        %v372 = vadd.f32 0.0, %v371
        %v373 = vpop.f32.mrf.mxu0
        %v374 = vadd.f32 0.0, %v373
        %375 = vmatmul.bf16.gmra.mxu0 %v350
        %v376 = vpop.f32.mrf.mxu0
        %v377 = vadd.f32 0.0, %v376
        %v378 = vpop.f32.mrf.mxu0
        %v379 = vadd.f32 0.0, %v378
        %380 = vdwg.mxu0
        %s381 = scalar_lea.vmem %s287, 16
        %v382 = vld [vmem:[%s381] sm:$0xf]
        %v383 = vld [vmem:[%s381 + $0x4] sm:$0xf]
        %v384 = vld [vmem:[%s381 + $0x8] sm:$0xf]
        %v385 = vld [vmem:[%s381 + $0xc] sm:$0xf]
        %v386 = vpack.c.b16 %v317, %v316
        %v387 = vpack.c.b16 %v319, %v318
        %v388 = vpack.c.b16 %v321, %v320
        %v389 = vpack.c.b16 %v322, %v322
        %v394 = vunpack.c.l.b16 %v382
        %v395 = vunpack.c.l.b16 %v383
        %v396 = vunpack.c.l.b16 %v384
        %v397 = vunpack.c.l.b16 %v385
        %v398 = vpack.c.b16 %v395, %v394
        %v399 = vpack.c.b16 %v397, %v396
        %v403 = vsel %vm339, %v386, 0
        %v406 = vsel %vm339, %v387, 0
        %v409 = vsel %vm339, %v388, 0
        %v412 = vsel %vm339, %v389, 0
        %414 = vmatpush.bf16.msra.mxu0 0
        %415 = vmatpush.bf16.msra.mxu0 0
        %416 = vmatpush.bf16.msra.mxu0 0
        %417 = vmatpush.bf16.msra.mxu0 0
        %418 = vmatpush.bf16.msra.mxu0 0
        %419 = vmatpush.bf16.msra.mxu0 0
        %420 = vmatpush.bf16.msra.mxu0 %v399
        %421 = vmatpush.bf16.msra.mxu0 %v398
        %422 = vmatmul.bf16.gmra.mxu0 %v403
        %v423 = vpop.f32.mrf.mxu0
        %v424 = vadd.f32 0.0, %v423
        %v425 = vpop.f32.mrf.mxu0
        %v426 = vadd.f32 0.0, %v425
        %427 = vmatmul.bf16.gmra.mxu0 %v406
        %v428 = vpop.f32.mrf.mxu0
        %v429 = vadd.f32 0.0, %v428
        %v430 = vpop.f32.mrf.mxu0
        %v431 = vadd.f32 0.0, %v430
        %432 = vmatmul.bf16.gmra.mxu0 %v409
        %v433 = vpop.f32.mrf.mxu0
        %v434 = vadd.f32 0.0, %v433
        %v435 = vpop.f32.mrf.mxu0
        %v436 = vadd.f32 0.0, %v435
        %437 = vmatmul.bf16.gmra.mxu0 %v412
        %v438 = vpop.f32.mrf.mxu0
        %v439 = vadd.f32 0.0, %v438
        %v440 = vpop.f32.mrf.mxu0
        %441 = vdwg.mxu0
        %v442 = vadd.f32 %v362, %v424
        %v443 = vadd.f32 %v364, %v426
        %v444 = vadd.f32 %v367, %v429
        %v445 = vadd.f32 %v369, %v431
        %v446 = vadd.f32 %v372, %v434
        %v447 = vadd.f32 %v374, %v436
        %v448 = vadd.f32 %v377, %v439
        %v449 = vld [vmem:[%s281] sm:$0xf]
        %v451 = vsel %vm339, %v449, 0
        %453 = vmatpush.bf16.msra.mxu0 0
        %454 = vmatpush.bf16.msra.mxu0 0
        %455 = vmatpush.bf16.msra.mxu0 0
        %456 = vmatpush.bf16.msra.mxu0 0
        %457 = vmatpush.bf16.msra.mxu0 0
        %458 = vmatpush.bf16.msra.mxu0 0
        %459 = vmatpush.bf16.msra.mxu0 %v399
        %460 = vmatpush.bf16.msra.mxu0 %v398
        %461 = vmatmul.bf16.gmra.mxu0 %v451
        %v462 = vpop.f32.mrf.mxu0
        %v463 = vadd.f32 0.0, %v462
        %v464 = vpop.f32.mrf.mxu0
        %465 = vdwg.mxu0
        %v466 = vadd.f32 %v379, %v463
        %s467 = smul.u32 %s24, 64
        %s468 = scalar_lea.vmem %s253, %s467 [#allocation4]
        %469 = vst [vmem:[%s468] sm:$0xff] %v442
        %470 = vst [vmem:[%s468 + $0x8] sm:$0xff] %v443
        %471 = vst [vmem:[%s468 + $0x10] sm:$0xff] %v444
        %472 = vst [vmem:[%s468 + $0x18] sm:$0xff] %v445
        %473 = vst [vmem:[%s468 + $0x20] sm:$0xff] %v446
        %474 = vst [vmem:[%s468 + $0x28] sm:$0xff] %v447
        %475 = vst [vmem:[%s468 + $0x30] sm:$0xff] %v448
        %s476 = sadd.s32 %s467, 56
        %s477 = scalar_lea.vmem %s253, %s476 [#allocation4]
        %478 = vst [vmem:[%s477] sm:$0xff] %v466
        %v479 = vld [vmem:[#allocation2] sm:$0x1]
        %v480 = vadd.f32 %v442, %v443
        %v481 = vadd.f32 %v480, %v444
        %v482 = vadd.f32 %v481, %v445
        %v483 = vadd.f32 %v482, %v446
        %v484 = vadd.f32 %v483, %v447
        %v485 = vadd.f32 %v484, %v448
        %v486 = vrot.slane %v485, 4
        %v487 = vadd.f32 %v485, %v486
        %v488 = vrot.slane %v487, 2
        %v489 = vadd.f32 %v487, %v488
        %v490 = vrot.slane %v489, 1
        %v491 = vadd.f32 %v489, %v490
        %v492 = vrot.slane %v466, 4
        %v493 = vadd.f32 %v466, %v492
        %v494 = vrot.slane %v493, 2
        %v495 = vadd.f32 %v493, %v494
        %v496 = vrot.slane %v495, 1
        %v497 = vadd.f32 %v495, %v496
        %v498 = vadd.f32 %v491, %v497
        %v499 = vadd.f32 %v479, %v498
        %500 = vst [vmem:[#allocation2] sm:$0x1] %v499
        %v501 = vld [vmem:[#allocation3] sm:$0x1]
        %v502 = vmul.f32 %v442, %v442
        %v503 = vmul.f32 %v443, %v443
        %v504 = vmul.f32 %v444, %v444
        %v505 = vmul.f32 %v445, %v445
        %v506 = vmul.f32 %v446, %v446
        %v507 = vmul.f32 %v447, %v447
        %v508 = vmul.f32 %v448, %v448
        %v509 = vadd.f32 %v502, %v503
        %v510 = vadd.f32 %v509, %v504
        %v511 = vadd.f32 %v510, %v505
        %v512 = vadd.f32 %v511, %v506
        %v513 = vadd.f32 %v512, %v507
        %v514 = vadd.f32 %v513, %v508
        %v515 = vrot.slane %v514, 4
        %v516 = vadd.f32 %v514, %v515
        %v517 = vrot.slane %v516, 2
        %v518 = vadd.f32 %v516, %v517
        %v519 = vrot.slane %v518, 1
        %v520 = vadd.f32 %v518, %v519
        %v521 = vmul.f32 %v466, %v466
        %v522 = vrot.slane %v521, 4
        %v523 = vadd.f32 %v521, %v522
        %v524 = vrot.slane %v523, 2
        %v525 = vadd.f32 %v523, %v524
        %v526 = vrot.slane %v525, 1
        %v527 = vadd.f32 %v525, %v526
        %v528 = vadd.f32 %v520, %v527
        %v529 = vadd.f32 %v501, %v528
        %530 = vst [vmem:[#allocation3] sm:$0x1] %v529
        // Predicated region
        $region37: #{tpu_custom_call.1} parent=31 // pred_check
          %p531 = pneg %p289
        $region38: #{tpu_custom_call.1} parent=31 // pred_check_branch
          %533 = sbr.rel (%p531) target = $region40
        $region39: #{tpu_custom_call.1} parent=31 // pred_region
          %v534 = vld [vmem:[#allocation2] sm:$0x1]
          %v535 = vmul.f32 %v534, 0.015625
          %v536 = vld [vmem:[#allocation3] sm:$0x1]
          %v537 = vmul.f32 %v536, 0.015625
          %v538 = vmul.f32 %v535, %v535
          %v539 = vsub.f32 %v537, %v538
          %v540 = vmax.f32 %v539, 0.0
          %v541 = vadd.f32 %v540, 1e-05
          %v542 = vrsqrt.pop %v541
          %v543 = vmul.f32 %v542, %v541
          %v544 = vmul.f32 %v543, %v542
          %v545 = vmul.f32 0.5, %v544
          %v546 = vsub.f32 1.5, %v545
          %v547 = vmul.f32 %v542, %v546
          %vm548 = vweird.f32 %v541
          %vm549 = vweird.f32 %v542
          %vm550 = vmor %vm548, %vm549
          %v551 = vsel %vm550, %v542, %v547
          %v552 = vld [vmem:[%s253] sm:$0xff]
          %v553 = vld [vmem:[%s253 + $0x8] sm:$0xff]
          %v554 = vld [vmem:[%s253 + $0x10] sm:$0xff]
          %v555 = vld [vmem:[%s253 + $0x18] sm:$0xff]
          %v556 = vld [vmem:[%s253 + $0x20] sm:$0xff]
          %v557 = vld [vmem:[%s253 + $0x28] sm:$0xff]
          %v558 = vld [vmem:[%s253 + $0x30] sm:$0xff]
          %v559 = vld [vmem:[%s253 + $0x38] sm:$0xff]
          %v561 = vperm.slane %v535, 0
          %v563 = vsub.f32 %v552, %v561
          %v564 = vsub.f32 %v553, %v561
          %v565 = vsub.f32 %v554, %v561
          %v566 = vsub.f32 %v555, %v561
          %v567 = vsub.f32 %v556, %v561
          %v568 = vsub.f32 %v557, %v561
          %v569 = vsub.f32 %v558, %v561
          %v570 = vsub.f32 %v559, %v561
          %v572 = vperm.slane %v551, 0
          %v574 = vmul.f32 %v563, %v572
          %v575 = vmul.f32 %v564, %v572
          %v576 = vmul.f32 %v565, %v572
          %v577 = vmul.f32 %v566, %v572
          %v578 = vmul.f32 %v567, %v572
          %v579 = vmul.f32 %v568, %v572
          %v580 = vmul.f32 %v569, %v572
          %v581 = vmul.f32 %v570, %v572
          %vm582 = vcmp.ge.f32.partialorder %v574, 0.0
          %vm583 = vcmp.ge.f32.partialorder %v575, 0.0
          %vm584 = vcmp.ge.f32.partialorder %v576, 0.0
          %vm585 = vcmp.ge.f32.partialorder %v577, 0.0
          %vm586 = vcmp.ge.f32.partialorder %v578, 0.0
          %vm587 = vcmp.ge.f32.partialorder %v579, 0.0
          %vm588 = vcmp.ge.f32.partialorder %v580, 0.0
          %vm589 = vcmp.ge.f32.partialorder %v581, 0.0
          %v590 = vmul.f32 %v574, 0.2
          %v591 = vmul.f32 %v575, 0.2
          %v592 = vmul.f32 %v576, 0.2
          %v593 = vmul.f32 %v577, 0.2
          %v594 = vmul.f32 %v578, 0.2
          %v595 = vmul.f32 %v579, 0.2
          %v596 = vmul.f32 %v580, 0.2
          %v597 = vmul.f32 %v581, 0.2
          %v598 = vsel %vm582, %v574, %v590
          %v599 = vsel %vm583, %v575, %v591
          %v600 = vsel %vm584, %v576, %v592
          %v601 = vsel %vm585, %v577, %v593
          %v602 = vsel %vm586, %v578, %v594
          %v603 = vsel %vm587, %v579, %v595
          %v604 = vsel %vm588, %v580, %v596
          %v605 = vsel %vm589, %v581, %v597
          %606 = vst [vmem:[%s253] sm:$0xff] %v598
          %607 = vst [vmem:[%s253 + $0x8] sm:$0xff] %v599
          %608 = vst [vmem:[%s253 + $0x10] sm:$0xff] %v600
          %609 = vst [vmem:[%s253 + $0x18] sm:$0xff] %v601
          %610 = vst [vmem:[%s253 + $0x20] sm:$0xff] %v602
          %611 = vst [vmem:[%s253 + $0x28] sm:$0xff] %v603
          %612 = vst [vmem:[%s253 + $0x30] sm:$0xff] %v604
          %613 = vst [vmem:[%s253 + $0x38] sm:$0xff] %v605
        $region40: #{tpu_custom_call.1} parent=31 // pred_fallthru
          _
        %s614 = sand.u32 %s132, 1
        %s615 = scalar_lea.sflag [#allocation5], %s614
        %s616 = sand.u32 %s132, 1
        %s617 = smul.addr %s616, 64
        %s618 = scalar_lea.vmem [#allocation4], %s617
        // Predicated region
        $region41: #{tpu_custom_call.1} parent=31 // pred_check
          %p619 = pneg %p142
        $region42: #{tpu_custom_call.1} parent=31 // pred_check_branch
          %621 = sbr.rel (%p619) target = $region44
        $region43: #{tpu_custom_call.1} parent=31 // pred_region
          %623 = vsyncadd %s615, 0
          %s624 = smul.addr %s22, 8
          %s625 = sadd.s32 %s23, %s624
          %s626 = smul.addr %s625, 8
          %s627 = scalar_lea.hbm %s3, %s626
          %s628 = sshll.u32 %s618, 4
          %s629 = int_to_ptr.vmem [resolvable:$true] %s628
          %s630 = sshll.u32 %s627, 4
          %s631 = int_to_ptr.hbm [resolvable:$true] %s630
          %636 = dma.vmem_to_hbm [thread:$0]  %s629, 1024, %s631, %s615, 128, 128, 8
        $region44: #{tpu_custom_call.1} parent=31 // pred_fallthru
          _
      $region32: #{tpu_custom_call.1} parent=5 // pred_fallthru
        _
      %p637 = scmp.le.s32.totalorder 2, %s12
      // Predicated region
      $region45: #{tpu_custom_call.1} parent=5 // pred_check
        %p638 = pneg %p637
      $region46: #{tpu_custom_call.1} parent=5 // pred_check_branch
        %640 = sbr.rel (%p638) target = $region48
      $region47: #{tpu_custom_call.1} parent=5 // pred_region
        %s641 = ssub.s32 %s12, 2
        // Predicated region
        $region49: #{tpu_custom_call.1} parent=47 // pred_check
          %p642 = pneg %p148
        $region50: #{tpu_custom_call.1} parent=47 // pred_check_branch
          %644 = sbr.rel (%p642) target = $region52
        $region51: #{tpu_custom_call.1} parent=47 // pred_region
          %s645 = sand.u32 %s133, 1
          %s646 = scalar_lea.sflag [#allocation5], %s645
          %s647 = sand.u32 %s133, 1
          %s648 = smul.addr %s647, 64
          %s649 = scalar_lea.vmem [#allocation4], %s648
          %651 = dma.done %s646, 1024
        $region52: #{tpu_custom_call.1} parent=47 // pred_fallthru
          _
      $region48: #{tpu_custom_call.1} parent=5 // pred_fallthru
        _
    $region6: #{tpu_custom_call.1} parent=1 // loop_footer
      %s16 = sadd.s32 1, %s12
    $region7: #{tpu_custom_call.1} parent=1 // loop_footer_branch
      %11 = sbr.rel target = $region3
    $region8: #{tpu_custom_call.1} parent=1 // loop_exit
      _
    %652 = vsyncpa [#allocation5], 1
    %s653 = scalar_lea.sflag [#allocation5], 1
    %654 = vsyncpa %s653, 1

</llo_original>
